<compile_context>
chip_gen: v7x
topology: tpu7x:2x2x1
jax: 0.10.0
libtpu: 0.0.40
codegen_flags: <defaults>
</compile_context>

<pallas_src>
import jax
import jax.numpy as jnp
from jax.experimental import pallas as pl
from jax.experimental.pallas import tpu as pltpu

_EPS = 1e-5

# Per-sample slab bytes above which we switch from the VMEM-resident kernel to
# the two-pass tiled kernels. 4 MiB/sample => ~2*(in+out) = 16 MiB of
# double-buffered blocks plus temporaries, comfortably inside v7x's 64 MiB VMEM
# (and v5e/v6e's 128 MiB).
_RESIDENT_LIMIT_BYTES = 4 << 20
# Target tile size for the tiled path (lane-dense tiles, >= 512 rows x 128).
_TILE_BYTES = 2 << 20


def _compiler_params(dims, *buf_bytes):
    # ~2x for double buffering + headroom for in-kernel f32 temporaries.
    need = 3 * int(sum(buf_bytes)) + (4 << 20)
    limit = int(min(max(need, 16 << 20), 48 << 20))   # stay under v7x's 64 MiB
    return pltpu.CompilerParams(dimension_semantics=dims,
                                vmem_limit_bytes=limit)


def _pick_row_tile(n_rows, row_bytes, max_tile_bytes=_TILE_BYTES):
    """Largest row-tile TR with TR | n_rows, TR % 8 == 0 (or TR == n_rows)."""
    max_rows = max(8, max_tile_bytes // row_bytes)
    if n_rows <= max_rows:
        return n_rows
    t = int(min(n_rows, max_rows))
    t -= t % 8
    while t >= 8:
        if n_rows % t == 0:
            return t
        t -= 8
    return n_rows   # no clean divisor: fall back to whole-sample tiles


# ----------------------------- kernels ------------------------------------- #

def _resident_kernel(x_ref, w_ref, b_ref, o_ref):
    # x_ref/o_ref: (R, L) = one full sample; w_ref/b_ref: (R, 1) per-row affine.
    x = x_ref[...].astype(jnp.float32)
    count = x.shape[0] * x.shape[1]
    s = jnp.sum(x)                         # one streaming pass: sum + sum(x^2)
    ss = jnp.sum(x * x)
    mean = s / count
    var = jnp.maximum(ss / count - mean * mean, 0.0)
    inv = jax.lax.rsqrt(var + _EPS)
    w = w_ref[...].astype(jnp.float32)     # (R, 1)
    b = b_ref[...].astype(jnp.float32)     # (R, 1)
    scale = w * inv                        # fused affine: y = x*scale + shift
    shift = b - mean * scale
    o_ref[...] = (x * scale + shift).astype(o_ref.dtype)


def _stats_kernel(x_ref, sum_ref, sq_ref):
    # x_ref: (TR, L) tile of one sample.
    # sum_ref/sq_ref: (8, 128) per-sample accumulators, resident across the
    # reduction (tile) axis.
    @pl.when(pl.program_id(1) == 0)
    def _():
        sum_ref[...] = jnp.zeros_like(sum_ref)
        sq_ref[...] = jnp.zeros_like(sq_ref)

    x = x_ref[...].astype(jnp.float32)
    sum_ref[...] += jnp.sum(x)
    sq_ref[...] += jnp.sum(x * x)


def _norm_kernel(stats_ref, x_ref, w_ref, b_ref, o_ref):
    # stats_ref: (N, 2) f32 in SMEM -> [mean, inv_std] per sample.
    n = pl.program_id(0)
    mean = stats_ref[n, 0]
    inv = stats_ref[n, 1]
    w = w_ref[...].astype(jnp.float32)     # (TR, 1)
    b = b_ref[...].astype(jnp.float32)     # (TR, 1)
    scale = w * inv
    shift = b - mean * scale
    x = x_ref[...].astype(jnp.float32)     # (TR, L)
    o_ref[...] = (x * scale + shift).astype(o_ref.dtype)


# ----------------------------- wrapper -------------------------------------- #

def group_norm_1group(x, weight, bias,
                      resident_limit_bytes=_RESIDENT_LIMIT_BYTES):
    """GroupNorm(num_groups=1, num_channels=C) over NCHW input via Pallas."""
    N, C, H, W = x.shape
    HW = H * W

    if HW % 128 == 0:
        rep = HW // 128          # sublane+lane dense view: (N, C*HW/128, 128)
        R, L = C * rep, 128
    else:
        rep = 1                  # fallback: channels on sublanes, HW on lanes
        R, L = C, HW

    x3 = x.reshape(N, R, L)
    w_rows = jnp.repeat(weight, rep).reshape(R, 1)   # done once, not per step
    b_rows = jnp.repeat(bias, rep).reshape(R, 1)

    itemsize = jnp.dtype(x.dtype).itemsize
    sample_bytes = R * L * itemsize
    wb_bytes = R * jnp.dtype(weight.dtype).itemsize

    if sample_bytes <= resident_limit_bytes:
        # ---------- single-pass, whole sample resident in VMEM ----------
        out = pl.pallas_call(
            _resident_kernel,
            out_shape=jax.ShapeDtypeStruct((N, R, L), x.dtype),
            grid=(N,),
            in_specs=[
                pl.BlockSpec((None, R, L), lambda n: (n, 0, 0)),
                pl.BlockSpec((R, 1), lambda n: (0, 0)),
                pl.BlockSpec((R, 1), lambda n: (0, 0)),
            ],
            out_specs=pl.BlockSpec((None, R, L), lambda n: (n, 0, 0)),
            compiler_params=_compiler_params(
                ("parallel",), sample_bytes, sample_bytes, wb_bytes, wb_bytes),
        )(x3, w_rows, b_rows)
        return out.reshape(N, C, H, W)

    # ---------------- two-pass tiled (pipelined) path ----------------
    TR = _pick_row_tile(R, L * itemsize)
    n_tiles = R // TR
    tile_bytes = TR * L * itemsize
    stat_block_bytes = 8 * 128 * 4

    # Pass 1: per-sample sum and sum-of-squares, streamed over row tiles.
    sums, sqs = pl.pallas_call(
        _stats_kernel,
        out_shape=(jax.ShapeDtypeStruct((N, 8, 128), jnp.float32),
                   jax.ShapeDtypeStruct((N, 8, 128), jnp.float32)),
        grid=(N, n_tiles),
        in_specs=[pl.BlockSpec((None, TR, L), lambda n, t: (n, t, 0))],
        out_specs=(pl.BlockSpec((None, 8, 128), lambda n, t: (n, 0, 0)),
                   pl.BlockSpec((None, 8, 128), lambda n, t: (n, 0, 0))),
        compiler_params=_compiler_params(
            ("parallel", "arbitrary"),
            tile_bytes, stat_block_bytes, stat_block_bytes),
    )(x3)

    # Finalize the tiny per-sample stats in plain JAX (N scalars).
    count = jnp.float32(R * L)
    s = sums[:, 0, 0]
    ss = sqs[:, 0, 0]
    mean = s / count
    var = jnp.maximum(ss / count - mean * mean, 0.0)
    inv = jax.lax.rsqrt(var + _EPS)
    stats = jnp.stack([mean, inv], axis=-1).astype(jnp.float32)   # (N, 2)

    # Pass 2: fused (x * scale + shift), fully parallel over (sample, tile).
    out = pl.pallas_call(
        _norm_kernel,
        out_shape=jax.ShapeDtypeStruct((N, R, L), x.dtype),
        grid=(N, n_tiles),
        in_specs=[
            pl.BlockSpec(memory_space=pltpu.MemorySpace.SMEM),     # stats
            pl.BlockSpec((None, TR, L), lambda n, t: (n, t, 0)),   # x tile
            pl.BlockSpec((TR, 1), lambda n, t: (t, 0)),            # weight rows
            pl.BlockSpec((TR, 1), lambda n, t: (t, 0)),            # bias rows
        ],
        out_specs=pl.BlockSpec((None, TR, L), lambda n, t: (n, t, 0)),
        compiler_params=_compiler_params(
            ("parallel", "parallel"),
            tile_bytes, tile_bytes, TR * 4, TR * 4),
    )(stats, x3, w_rows, b_rows)
    return out.reshape(N, C, H, W)


def pre_norm(x, weight, bias, fn=lambda y: y):
    """PreNorm.forward: fn(GroupNorm(1, dim)(x)). `fn` stays in plain JAX."""
    # TODO(synk): once a concrete `fn` is specified (conv/attention block),
    # fuse at least its first matmul into the normalize pass — the normalized
    # tile is already in VMEM in f32, saving a full HBM round-trip.
    return fn(group_norm_1group(x, weight, bias))


def _reference(x, weight, bias):
    N, C, H, W = x.shape
    xf = x.astype(jnp.float32).reshape(N, -1)
    mean = xf.mean(axis=1, keepdims=True)
    var = ((xf - mean) ** 2).mean(axis=1, keepdims=True)
    xn = ((xf - mean) / jnp.sqrt(var + _EPS)).reshape(N, C, H, W)
    return (xn * weight[None, :, None, None] +
            bias[None, :, None, None]).astype(x.dtype)


if __name__ == "__main__":
    key = jax.random.PRNGKey(0)
    kx, kw, kb = jax.random.split(key, 3)

    N, C, H, W = 2, 4, 16, 16
    x = jax.random.normal(kx, (N, C, H, W), dtype=jnp.float32)
    # PyTorch inits GroupNorm affine to (1, 0); use random values to exercise
    # the affine path non-trivially.
    weight = jax.random.normal(kw, (C,), dtype=jnp.float32)
    bias = jax.random.normal(kb, (C,), dtype=jnp.float32)

    ref = _reference(x, weight, bias)

    # Resident (single-pass, whole sample in VMEM) path.
    out = jax.block_until_ready(pre_norm(x, weight, bias, fn=lambda y: y))
    assert out.shape == (N, C, H, W)
    assert jnp.allclose(out, ref, atol=1e-4, rtol=1e-4), "resident path mismatch"

    # Tiled two-pass path (forced, to exercise the pipelined kernels too).
    out_tiled = jax.block_until_ready(
        group_norm_1group(x, weight, bias, resident_limit_bytes=0))
    assert jnp.allclose(out_tiled, ref, atol=1e-4, rtol=1e-4), "tiled path mismatch"

    print("KERNEL_OK")
</pallas_src>

<mosaic_0001>
module attributes {stable_mosaic.version = 11 : i64} {
  func.func @_resident_kernel(%arg0: i32, %arg1: memref<1x8x128xf32, #tpu.memory_space<vmem>>, %arg2: memref<8x1xf32, #tpu.memory_space<vmem>>, %arg3: memref<8x1xf32, #tpu.memory_space<vmem>>, %arg4: memref<1x8x128xf32, #tpu.memory_space<vmem>>) attributes {dimension_semantics = [#tpu.dimension_semantics<parallel>], iteration_bounds = array<i64: 2>, scalar_prefetch = 0 : i64, scratch_operands = 0 : i64, tpu.core_type = #tpu.core_type<tc>, window_params = [{transform_indices = @transform_0, window_bounds = array<i64: 1, 8, 128>}, {pipeline_mode = #tpu.pipeline_mode<synchronous>, transform_indices = @transform_1, window_bounds = array<i64: 8, 1>}, {pipeline_mode = #tpu.pipeline_mode<synchronous>, transform_indices = @transform_2, window_bounds = array<i64: 8, 1>}, {transform_indices = @transform_3, window_bounds = array<i64: 1, 8, 128>}]} {
    %c0 = arith.constant 0 : index
    %c0_0 = arith.constant 0 : index
    %c0_1 = arith.constant 0 : index
    %0 = vector.load %arg1[%c0, %c0_0, %c0_1] : memref<1x8x128xf32, #tpu.memory_space<vmem>>, vector<1x8x128xf32>
    %1 = vector.shape_cast %0 : vector<1x8x128xf32> to vector<8x128xf32>
    %2 = vector.shape_cast %1 : vector<8x128xf32> to vector<1x8x128xf32>
    %cst = arith.constant dense<0.000000e+00> : vector<1xf32>
    %3 = vector.multi_reduction <add>, %2, %cst [1, 2] : vector<1x8x128xf32> to vector<1xf32>
    %4 = vector.shape_cast %3 : vector<1xf32> to vector<1x1x1xf32>
    %5 = vector.extract %4[0, 0, 0] : f32 from vector<1x1x1xf32>
    %6 = arith.mulf %1, %1 : vector<8x128xf32>
    %7 = vector.shape_cast %6 : vector<8x128xf32> to vector<1x8x128xf32>
    %cst_2 = arith.constant dense<0.000000e+00> : vector<1xf32>
    %8 = vector.multi_reduction <add>, %7, %cst_2 [1, 2] : vector<1x8x128xf32> to vector<1xf32>
    %9 = vector.shape_cast %8 : vector<1xf32> to vector<1x1x1xf32>
    %10 = vector.extract %9[0, 0, 0] : f32 from vector<1x1x1xf32>
    %cst_3 = arith.constant 1.024000e+03 : f32
    %11 = arith.divf %5, %cst_3 : f32
    %cst_4 = arith.constant 1.024000e+03 : f32
    %12 = arith.divf %10, %cst_4 : f32
    %13 = arith.mulf %11, %11 : f32
    %14 = arith.subf %12, %13 : f32
    %cst_5 = arith.constant 0.000000e+00 : f32
    %15 = arith.maximumf %14, %cst_5 : f32
    %cst_6 = arith.constant 9.99999974E-6 : f32
    %16 = arith.addf %15, %cst_6 : f32
    %17 = math.rsqrt %16 : f32
    %c0_7 = arith.constant 0 : index
    %c0_8 = arith.constant 0 : index
    %18 = vector.load %arg2[%c0_7, %c0_8] : memref<8x1xf32, #tpu.memory_space<vmem>>, vector<8x1xf32>
    %c0_9 = arith.constant 0 : index
    %c0_10 = arith.constant 0 : index
    %19 = vector.load %arg3[%c0_9, %c0_10] : memref<8x1xf32, #tpu.memory_space<vmem>>, vector<8x1xf32>
    %20 = vector.broadcast %17 : f32 to vector<8x1xf32>
    %21 = arith.mulf %18, %20 : vector<8x1xf32>
    %22 = vector.broadcast %11 : f32 to vector<8x1xf32>
    %23 = arith.mulf %22, %21 : vector<8x1xf32>
    %24 = arith.subf %19, %23 : vector<8x1xf32>
    %25 = vector.broadcast %21 : vector<8x1xf32> to vector<8x128xf32>
    %26 = arith.mulf %1, %25 : vector<8x128xf32>
    %27 = vector.broadcast %24 : vector<8x1xf32> to vector<8x128xf32>
    %28 = arith.addf %26, %27 : vector<8x128xf32>
    %c0_11 = arith.constant 0 : index
    %c0_12 = arith.constant 0 : index
    %c0_13 = arith.constant 0 : index
    %29 = vector.load %arg4[%c0_11, %c0_12, %c0_13] : memref<1x8x128xf32, #tpu.memory_space<vmem>>, vector<1x8x128xf32>
    %30 = vector.shape_cast %29 : vector<1x8x128xf32> to vector<8x128xf32>
    %31 = vector.shape_cast %28 : vector<8x128xf32> to vector<1x8x128xf32>
    tpu.vector_store %arg4[%c0_11, %c0_12, %c0_13], %31 {strides = array<i32>} : memref<1x8x128xf32, #tpu.memory_space<vmem>>, vector<1x8x128xf32>,
    return
  }
  func.func @transform_0(%arg0: i32) -> (i32, i32, i32) {
    %c0_i32 = arith.constant 0 : i32
    %c0_i32_0 = arith.constant 0 : i32
    %c0_i32_1 = arith.constant 0 : i32
    return %arg0, %c0_i32, %c0_i32_0 : i32, i32, i32
  }
  func.func @transform_1(%arg0: i32) -> (i32, i32) {
    %c0_i32 = arith.constant 0 : i32
    %c0_i32_0 = arith.constant 0 : i32
    %c0_i32_1 = arith.constant 0 : i32
    return %c0_i32, %c0_i32_0 : i32, i32
  }
  func.func @transform_2(%arg0: i32) -> (i32, i32) {
    %c0_i32 = arith.constant 0 : i32
    %c0_i32_0 = arith.constant 0 : i32
    %c0_i32_1 = arith.constant 0 : i32
    return %c0_i32, %c0_i32_0 : i32, i32
  }
  func.func @transform_3(%arg0: i32) -> (i32, i32, i32) {
    %c0_i32 = arith.constant 0 : i32
    %c0_i32_0 = arith.constant 0 : i32
    %c0_i32_1 = arith.constant 0 : i32
    return %arg0, %c0_i32, %c0_i32_0 : i32, i32, i32
  }
}

</mosaic_0001>

<llo_original>
// kernel: tpu_custom_call.1
$region0: #{tpu_custom_call.1}
  #allocation0 [shape = 'u32[]', space=smem, size = 0x4, offset = 0x4, fixed_abs, tag = 'smem constant byte address 0x4 - core index']
  #allocation1 [shape = 'u32[144,128]{1,0:T(1,128)}', space=vmem, size = 0x12000, scoped, tag = 'internal scratch']
  %s0 = inlined_call_operand.vmem [shape: f32[2,8,128], index: 0, kind: input, shape index: {}]
  %s1 = inlined_call_operand.vmem [shape: f32[8,1], index: 1, kind: input, shape index: {}]
  %s2 = inlined_call_operand.vmem [shape: f32[8,1], index: 2, kind: input, shape index: {}]
  %s3 = inlined_call_operand.hbm [shape: f32[2,8,128], index: 3, kind: output, shape index: {}]
  %s4 = sld [smem:[#allocation0]]
  $region45: #{tpu_custom_call.1} parent=0
    _
  %s6 = ssub.s32 1, %s4
  %s7 = scalar_select 0, %s6, %s4
  $region1: #{tpu_custom_call.1} parent=0
    #allocation2 [shape = 'u8[8192]{0}', space=vmem, size = 0x2000, scoped, tag = 'output window, operand 0']
    #allocation3 [shape = 's32[2]{0}', space=sflag, size = 0x8, scoped, tag = 'scoped memory for tpu_custom_call.1']
    %8 = vsyncpa [#allocation3], 0
    %s9 = scalar_lea.sflag [#allocation3], 1
    %10 = vsyncpa %s9, 0
    loop: start=0, step=1, limit=4
    $region2: #{tpu_custom_call.1} parent=1 // loop_pre_header
      _
    $region3: #{tpu_custom_call.1} parent=1 // loop_header
      %s12 = sphi 0, %s16
      %p13 = scmp.ge.s32.totalorder %s12, 4
      %s22 = sphi 0, %s24
      %s25 = sphi 0, %s22
      %s26 = sphi 0, %s25
      %s42 = sphi 0, %s26
      %s46 = sphi 0, %s46
      %s48 = sphi 0, %s46
      %s49 = sphi 0, %s48
      %s63 = sphi 0, %s49
      %s67 = sphi 0, %s67
      %s69 = sphi 0, %s67
      %s70 = sphi 0, %s69
      %s84 = sphi 0, %s70
      %s90 = sphi 0, %s92
      %s93 = sphi 0, %s90
      %s94 = sphi 0, %s93
      %s110 = sphi 0, %s94
    $region4: #{tpu_custom_call.1} parent=1 // loop_header_branch
      %15 = sbr.rel (%p13) target = $region8
    $region5: #{tpu_custom_call.1} parent=1 // loop_body
      %s17 = ssub.s32 %s12, 1
      %s18 = ssub.s32 %s12, 2
      %s19 = sadd.s32 %s12, 1
      %s20 = ssub.s32 %s12, %s19
      %p21 = scmp.eq.s32.totalorder %s20, 0
      %s23 = sadd.s32 %s22, 1
      %s24 = scalar_select %p21, %s22, %s23
      %p27 = pneg %p21
      %p28 = scmp.eq.s32.totalorder %s12, 1
      %p29 = por %p27, %p28
      %p30 = scmp.ne.s32.totalorder %s22, %s25
      %p31 = scmp.eq.s32.totalorder %s12, 0
      %p32 = por %p30, %p31
      %p33 = scmp.ne.s32.totalorder %s22, %s25
      %p34 = scmp.eq.s32.totalorder %s17, 1
      %p35 = por %p33, %p34
      %p36 = scmp.ne.s32.totalorder %s25, %s26
      %p37 = scmp.eq.s32.totalorder %s17, 0
      %p38 = por %p36, %p37
      %p39 = scmp.ne.s32.totalorder %s25, %s26
      %p40 = scmp.eq.s32.totalorder %s18, 1
      %p41 = por %p39, %p40
      %p43 = scmp.ne.s32.totalorder %s26, %s42
      %p44 = scmp.eq.s32.totalorder %s18, 0
      %p45 = por %p43, %p44
      %s47 = sadd.s32 %s46, 1
      %p50 = scmp.eq.s32.totalorder %s12, 1
      %p51 = scmp.ne.s32.totalorder %s46, %s48
      %p52 = scmp.eq.s32.totalorder %s12, 0
      %p53 = por %p51, %p52
      %p54 = scmp.ne.s32.totalorder %s46, %s48
      %p55 = scmp.eq.s32.totalorder %s17, 1
      %p56 = por %p54, %p55
      %p57 = scmp.ne.s32.totalorder %s48, %s49
      %p58 = scmp.eq.s32.totalorder %s17, 0
      %p59 = por %p57, %p58
      %p60 = scmp.ne.s32.totalorder %s48, %s49
      %p61 = scmp.eq.s32.totalorder %s18, 1
      %p62 = por %p60, %p61
      %p64 = scmp.ne.s32.totalorder %s49, %s63
      %p65 = scmp.eq.s32.totalorder %s18, 0
      %p66 = por %p64, %p65
      %s68 = sadd.s32 %s67, 1
      %p71 = scmp.eq.s32.totalorder %s12, 1
      %p72 = scmp.ne.s32.totalorder %s67, %s69
      %p73 = scmp.eq.s32.totalorder %s12, 0
      %p74 = por %p72, %p73
      %p75 = scmp.ne.s32.totalorder %s67, %s69
      %p76 = scmp.eq.s32.totalorder %s17, 1
      %p77 = por %p75, %p76
      %p78 = scmp.ne.s32.totalorder %s69, %s70
      %p79 = scmp.eq.s32.totalorder %s17, 0
      %p80 = por %p78, %p79
      %p81 = scmp.ne.s32.totalorder %s69, %s70
      %p82 = scmp.eq.s32.totalorder %s18, 1
      %p83 = por %p81, %p82
      %p85 = scmp.ne.s32.totalorder %s70, %s84
      %p86 = scmp.eq.s32.totalorder %s18, 0
      %p87 = por %p85, %p86
      %s88 = ssub.s32 %s12, %s19
      %p89 = scmp.eq.s32.totalorder %s88, 0
      %s91 = sadd.s32 %s90, 1
      %s92 = scalar_select %p89, %s90, %s91
      %p95 = pneg %p89
      %p96 = scmp.eq.s32.totalorder %s12, 1
      %p97 = por %p95, %p96
      %p98 = scmp.ne.s32.totalorder %s90, %s93
      %p99 = scmp.eq.s32.totalorder %s12, 0
      %p100 = por %p98, %p99
      %p101 = scmp.ne.s32.totalorder %s90, %s93
      %p102 = scmp.eq.s32.totalorder %s17, 1
      %p103 = por %p101, %p102
      %p104 = scmp.ne.s32.totalorder %s93, %s94
      %p105 = scmp.eq.s32.totalorder %s17, 0
      %p106 = por %p104, %p105
      %p107 = scmp.ne.s32.totalorder %s93, %s94
      %p108 = scmp.eq.s32.totalorder %s18, 1
      %p109 = por %p107, %p108
      %p111 = scmp.ne.s32.totalorder %s94, %s110
      %p112 = scmp.eq.s32.totalorder %s18, 0
      %p113 = por %p111, %p112
      %p114 = scmp.le.s32.totalorder 1, %s12
      %p115 = scmp.lt.s32.totalorder %s12, 3
      %p116 = pnand %p114, %p115
      %p117 = pneg %p116
      // Predicated region
      $region9: #{tpu_custom_call.1} parent=5 // pred_check
        _
      $region10: #{tpu_custom_call.1} parent=5 // pred_check_branch
        %119 = sbr.rel (%p116) target = $region12
      $region11: #{tpu_custom_call.1} parent=5 // pred_region
        %s120 = ssub.s32 %s12, 1
        // Predicated region
        $region13: #{tpu_custom_call.1} parent=11 // pred_check
          %p121 = pneg %p59
        $region14: #{tpu_custom_call.1} parent=11 // pred_check_branch
          %123 = sbr.rel (%p121) target = $region16
        $region15: #{tpu_custom_call.1} parent=11 // pred_region
          _
        $region16: #{tpu_custom_call.1} parent=11 // pred_fallthru
          _
        // Predicated region
        $region17: #{tpu_custom_call.1} parent=11 // pred_check
          %p124 = pneg %p80
        $region18: #{tpu_custom_call.1} parent=11 // pred_check_branch
          %126 = sbr.rel (%p124) target = $region20
        $region19: #{tpu_custom_call.1} parent=11 // pred_region
          _
        $region20: #{tpu_custom_call.1} parent=11 // pred_fallthru
          _
      $region12: #{tpu_custom_call.1} parent=5 // pred_fallthru
        _
      %p127 = scmp.lt.s32.totalorder %s12, 2
      // Predicated region
      $region21: #{tpu_custom_call.1} parent=5 // pred_check
        %p128 = pneg %p127
      $region22: #{tpu_custom_call.1} parent=5 // pred_check_branch
        %130 = sbr.rel (%p128) target = $region24
      $region23: #{tpu_custom_call.1} parent=5 // pred_region
        // Predicated region
        $region25: #{tpu_custom_call.1} parent=23 // pred_check
          %p131 = pneg %p32
        $region26: #{tpu_custom_call.1} parent=23 // pred_check_branch
          %133 = sbr.rel (%p131) target = $region28
        $region27: #{tpu_custom_call.1} parent=23 // pred_region
          %p134 = scmp.lt.s32.totalorder %s12, 1
          %s135 = scalar_select %p134, %s12, 1
          %s136 = smul.addr %s135, 8
          %s137 = scalar_lea.vmem %s0, %s136
        $region28: #{tpu_custom_call.1} parent=23 // pred_fallthru
          _
      $region24: #{tpu_custom_call.1} parent=5 // pred_fallthru
        _
      %p138 = scmp.le.s32.totalorder 1, %s12
      %p139 = scmp.lt.s32.totalorder %s12, 3
      %p140 = pnand %p138, %p139
      %p141 = pneg %p140
      // Predicated region
      $region29: #{tpu_custom_call.1} parent=5 // pred_check
        _
      $region30: #{tpu_custom_call.1} parent=5 // pred_check_branch
        %143 = sbr.rel (%p140) target = $region32
      $region31: #{tpu_custom_call.1} parent=5 // pred_region
        %s144 = ssub.s32 %s12, 1
        %p145 = scmp.lt.s32.totalorder %s17, 1
        %s146 = scalar_select %p145, %s17, 1
        %s147 = smul.addr %s146, 8
        %s148 = scalar_lea.vmem %s0, %s147
        %p149 = pneg %p38
        %p150 = pneg %p35
        %p151 = pneg %p59
        %p152 = pneg %p56
        %p153 = pneg %p80
        %p154 = pneg %p77
        %p155 = pneg %p106
        %p156 = pneg %p103
        %s157 = sand.u32 %s93, 1
        %s158 = scalar_lea.sflag [#allocation3], %s157
        %s159 = sand.u32 %s93, 1
        %s160 = smul.addr %s159, 8
        %s161 = scalar_lea.vmem [#allocation2], %s160
        %p162 = scmp.lt.s32.totalorder %s17, 1
        %s163 = scalar_select %p162, %s17, 1
        %s164 = smul.addr %s163, 8
        %s165 = scalar_lea.vmem %s0, %s164
        %v166 = vld [vmem:[%s165] sm:$0xff]
        %167 = vadd.xlane.f32.xlu0 %v166
        %v168 = vpop.xlane.xlu0 %167
        %v169 = vrot.slane %v168, 4
        %v170 = vadd.f32 %v168, %v169
        %v171 = vrot.slane %v170, 2
        %v172 = vadd.f32 %v170, %v171
        %v173 = vrot.slane %v172, 1
        %v174 = vadd.f32 %v172, %v173
        %s175 = vtos %v174
        %v176 = vmul.f32 %v166, %v166
        %177 = vadd.xlane.f32.xlu0 %v176
        %v178 = vpop.xlane.xlu0 %177
        %v179 = vrot.slane %v178, 4
        %v180 = vadd.f32 %v178, %v179
        %v181 = vrot.slane %v180, 2
        %v182 = vadd.f32 %v180, %v181
        %v183 = vrot.slane %v182, 1
        %v184 = vadd.f32 %v182, %v183
        %s185 = vtos %v184
        %v186 = vrcp.pop 1024.0
        %s187 = vtos %v186
        %s188 = smul.f32 %s175, %s187
        %v189 = vrcp.pop 1024.0
        %s190 = vtos %v189
        %s191 = smul.f32 %s185, %s190
        %s192 = smul.f32 %s188, %s188
        %s193 = ssub.f32 %s191, %s192
        %s194 = smax.f32 %s193, 0.0
        %s195 = sadd.f32 %s194, 1e-05
        %v196 = vstv %s195
        %v197 = vrsqrt.pop %v196
        %s198 = vtos %v197
        %v199 = vld [vmem:[%s1] sm:$0xff]
        %v200 = vld [vmem:[%s2] sm:$0xff]
        %v201 = vstv %s198
        %v202 = vmul.f32 %v199, %v201
        %v203 = vstv %s188
        %v204 = vmul.f32 %v203, %v202
        %v205 = vsub.f32 %v200, %v204
        %207 = vset.pattern.permute.xlu0 0
        %208 = vperm.xlu0 %207, %v202
        %v209 = vpop.permute.xlu0 %208
        %v211 = vmul.f32 %v166, %v209
        %213 = vset.pattern.permute.xlu0 0
        %214 = vperm.xlu0 %213, %v205
        %v215 = vpop.permute.xlu0 %214
        %v217 = vadd.f32 %v211, %v215
        %218 = vst [vmem:[%s161] sm:$0xff] %v217
        %s219 = sand.u32 %s93, 1
        %s220 = scalar_lea.sflag [#allocation3], %s219
        %s221 = sand.u32 %s93, 1
        %s222 = smul.addr %s221, 8
        %s223 = scalar_lea.vmem [#allocation2], %s222
        // Predicated region
        $region33: #{tpu_custom_call.1} parent=31 // pred_check
          %p224 = pneg %p103
        $region34: #{tpu_custom_call.1} parent=31 // pred_check_branch
          %226 = sbr.rel (%p224) target = $region36
        $region35: #{tpu_custom_call.1} parent=31 // pred_region
          %s228 = ssub.s32 128, 128
          %229 = vsyncadd %s220, %s228
          %s230 = smul.addr %s17, 128
          %s231 = scalar_lea.hbm %s3, %s230
          %s233 = sshll.u32 %s223, 4
          %s234 = int_to_ptr.vmem [resolvable:$true] %s233
          %236 = dma.vmem_to_hbm [thread:$0]  %s234, 128, %s231, %s220
        $region36: #{tpu_custom_call.1} parent=31 // pred_fallthru
          _
      $region32: #{tpu_custom_call.1} parent=5 // pred_fallthru
        _
      %p237 = scmp.le.s32.totalorder 2, %s12
      // Predicated region
      $region37: #{tpu_custom_call.1} parent=5 // pred_check
        %p238 = pneg %p237
      $region38: #{tpu_custom_call.1} parent=5 // pred_check_branch
        %240 = sbr.rel (%p238) target = $region40
      $region39: #{tpu_custom_call.1} parent=5 // pred_region
        %s241 = ssub.s32 %s12, 2
        // Predicated region
        $region41: #{tpu_custom_call.1} parent=39 // pred_check
          %p242 = pneg %p109
        $region42: #{tpu_custom_call.1} parent=39 // pred_check_branch
          %244 = sbr.rel (%p242) target = $region44
        $region43: #{tpu_custom_call.1} parent=39 // pred_region
          %s245 = sand.u32 %s94, 1
          %s246 = scalar_lea.sflag [#allocation3], %s245
          %s247 = sand.u32 %s94, 1
          %s248 = smul.addr %s247, 8
          %s249 = scalar_lea.vmem [#allocation2], %s248
          %250 = dma.done %s246, 128
        $region44: #{tpu_custom_call.1} parent=39 // pred_fallthru
          _
      $region40: #{tpu_custom_call.1} parent=5 // pred_fallthru
        _
    $region6: #{tpu_custom_call.1} parent=1 // loop_footer
      %s16 = sadd.s32 1, %s12
    $region7: #{tpu_custom_call.1} parent=1 // loop_footer_branch
      %11 = sbr.rel target = $region3
    $region8: #{tpu_custom_call.1} parent=1 // loop_exit
      _
    %251 = vsyncpa [#allocation3], 1
    %s252 = scalar_lea.sflag [#allocation3], 1
    %253 = vsyncpa %s252, 1

</llo_original>
